<compile_context>
chip_gen: v6e
topology: v6e:2x2x1
jax: 0.10.0
libtpu: 0.0.40
codegen_flags: <defaults>
</compile_context>

<pallas_src>
import jax
import jax.numpy as jnp
from jax.experimental import pallas as pl
from jax.experimental.pallas import tpu as pltpu


def _round_up(x, m):
    return ((x + m - 1) // m) * m


def _cdiv(a, b):
    return (a + b - 1) // b


def _sublane(*dtypes):
    """Minimum sublane multiple for the packed dtypes touched by the kernel."""
    s = 8
    for dt in dtypes:
        s = max(s, 32 // max(1, jnp.dtype(dt).itemsize))
    return s


# ----------------------------------------------------------------------------
# Pallas kernel: linear classifier head (bias fused)
# ----------------------------------------------------------------------------
def _classifier_kernel(x_ref, w_ref, b_ref, o_ref):
    """One row-tile of the classifier head: o = x @ w + b.

    x_ref : (TM, H)   token hidden states (row tile, compute dtype, e.g. bf16)
    w_ref : (H, LP)   classifier weight, transposed & lane-padded to LP=128k
    b_ref : (1, LP)   classifier bias (f32), lane-padded
    o_ref : (TM, LP)  logits, lane-dense store
    """
    acc = jnp.dot(x_ref[...], w_ref[...], preferred_element_type=jnp.float32)
    o_ref[...] = (acc + b_ref[...]).astype(o_ref.dtype)


def _select_row_tile(rows, row_tile, sublane):
    """Pick a row-tile size that avoids the zero-pad pass whenever possible."""
    row_tile = max(sublane, _round_up(row_tile, sublane))
    if rows <= row_tile:
        # One tile covers everything; split in two when it divides cleanly so
        # the ("parallel",) grid axis keeps both v7x TensorCores busy.
        if rows >= 4 * sublane and rows % (2 * sublane) == 0:
            return rows // 2
        return _round_up(rows, sublane)
    # Prefer a sublane-aligned divisor of rows in [row_tile/2, row_tile]:
    # the hidden slab then needs no padded copy at all.
    tm = row_tile
    while tm >= row_tile // 2:
        if rows % tm == 0:
            return tm
        tm -= sublane
    # Otherwise split as evenly as possible; only a small tail gets padded.
    return _round_up(_cdiv(rows, _cdiv(rows, row_tile)), sublane)


def classifier_head(hidden, weight_t, bias, *, row_tile=512,
                    compute_dtype=jnp.bfloat16, out_dtype=None):
    """hidden: (B, S, H) -> logits: (B, S, L) via a Pallas MXU kernel."""
    B, S, H = hidden.shape
    L = weight_t.shape[1]
    rows = B * S
    if out_dtype is None:
        out_dtype = hidden.dtype

    # bf16 operands (f32 accumulate in-kernel) halve the dominant HBM read.
    x2d = hidden.reshape(rows, H).astype(compute_dtype)

    # Lane-dense output: pad labels to a multiple of 128 (full vst, no vst.msk).
    LP = _round_up(max(L, 128), 128)
    w_pad = jnp.zeros((H, LP), compute_dtype).at[:, :L].set(
        weight_t.astype(compute_dtype))
    b_pad = jnp.zeros((1, LP), jnp.float32).at[0, :L].set(
        bias.astype(jnp.float32))

    sub = _sublane(compute_dtype, out_dtype)
    tm = _select_row_tile(rows, row_tile, sub)
    steps = _cdiv(rows, tm)
    rows_p = steps * tm
    if rows_p != rows:
        # Rare fallback (tiny inputs or no aligned divisor): pad the remainder.
        x2d = jnp.zeros((rows_p, H), x2d.dtype).at[:rows, :].set(x2d)

    # Explicit VMEM budget: double-buffered x/out tiles + resident weight/bias,
    # 2x headroom, clamped to what every generation (v5e..v7x) can grant.
    need = (2 * tm * H * jnp.dtype(compute_dtype).itemsize
            + 2 * tm * LP * jnp.dtype(out_dtype).itemsize
            + 2 * H * LP * jnp.dtype(compute_dtype).itemsize
            + 2 * LP * 4)
    vmem_limit = int(min(64 << 20, max(2 * need, 8 << 20)))

    out = pl.pallas_call(
        _classifier_kernel,
        out_shape=jax.ShapeDtypeStruct((rows_p, LP), out_dtype),
        grid_spec=pltpu.PrefetchScalarGridSpec(
            num_scalar_prefetch=0,
            grid=(steps,),
            in_specs=[
                pl.BlockSpec((tm, H), lambda i: (i, 0)),
                # Constant index maps: weight/bias DMA'd once, stay resident.
                pl.BlockSpec((H, LP), lambda i: (0, 0)),
                pl.BlockSpec((1, LP), lambda i: (0, 0)),
            ],
            out_specs=pl.BlockSpec((tm, LP), lambda i: (i, 0)),
        ),
        compiler_params=pltpu.CompilerParams(
            dimension_semantics=("parallel",),
            vmem_limit_bytes=vmem_limit),
    )(x2d, w_pad, b_pad)

    # TODO(synk): downstream consumers could read the padded (rows_p, 128)
    #             slab directly and skip this compaction pass entirely.
    return out[:rows, :L].reshape(B, S, L)


# ----------------------------------------------------------------------------
# Deterministic synthetic "BERT" stub (plain-JAX glue): embedding lookup +
# positional add + small dense; stands in for output[1][-1] (last hidden state)
# ----------------------------------------------------------------------------
def tiny_bert_last_hidden(params, input_ids, attention_mask=None):
    emb = params["tok_emb"][input_ids]                        # (B, S, H)
    S = input_ids.shape[1]
    emb = emb + params["pos_emb"][:S][None, :, :]
    h = jnp.tanh(emb @ params["enc_w"] + params["enc_b"])     # (B, S, H)
    if attention_mask is not None:
        h = h * attention_mask[..., None].astype(h.dtype)
    return h


# ----------------------------------------------------------------------------
# Full EventExtractorClassifer forward
# ----------------------------------------------------------------------------
def event_extractor_classifier_forward(params, input_ids, attention_mask=None,
                                       training=False, rng=None, p_drop=0.3):
    hidden = tiny_bert_last_hidden(params, input_ids, attention_mask)
    if training and p_drop > 0.0:
        # Inverted dropout as plain-JAX glue (identity in eval mode, matching
        # PyTorch module.eval()).  An explicit rng is required so repeated
        # training calls don't silently reuse the same mask.
        if rng is None:
            raise ValueError("training=True dropout requires an explicit rng key")
        keep = jax.random.bernoulli(rng, 1.0 - p_drop, hidden.shape)
        hidden = jnp.where(keep, hidden / (1.0 - p_drop), 0.0).astype(hidden.dtype)
    return classifier_head(hidden, params["cls_w_t"], params["cls_b"])


# ----------------------------------------------------------------------------
# Deterministic parameter init
# ----------------------------------------------------------------------------
def init_params(key, vocab=50, hidden=32, num_labels=8, max_seq=16):
    ks = jax.random.split(key, 6)
    scale = 0.02
    return {
        "tok_emb": scale * jax.random.normal(ks[0], (vocab, hidden), jnp.float32),
        "pos_emb": scale * jax.random.normal(ks[1], (max_seq, hidden), jnp.float32),
        "enc_w":   scale * jax.random.normal(ks[2], (hidden, hidden), jnp.float32),
        "enc_b":   jnp.zeros((hidden,), jnp.float32),
        # torch Linear stores (num_labels, hidden); keep the transpose (H, L).
        "cls_w_t": scale * jax.random.normal(ks[3], (hidden, num_labels), jnp.float32),
        "cls_b":   scale * jax.random.normal(ks[4], (num_labels,), jnp.float32),
    }


if __name__ == "__main__":
    key = jax.random.PRNGKey(0)
    B, S, H, L, V = 2, 8, 32, 8, 50

    params = init_params(key, vocab=V, hidden=H, num_labels=L, max_seq=S)
    k_ids, k_drop = jax.random.split(key)
    input_ids = jax.random.randint(k_ids, (B, S), 0, V, dtype=jnp.int32)
    attention_mask = jnp.ones((B, S), dtype=jnp.int32)

    # Eval-mode forward (dropout == identity), matches PyTorch module.eval().
    logits = event_extractor_classifier_forward(
        params, input_ids, attention_mask, training=False)
    logits = jax.block_until_ready(logits)
    assert logits.shape == (B, S, L)

    # Reference check (eval mode): same bf16 operand rounding, f32 accumulate,
    # f32 bias add — matches the kernel's numerics.
    hidden = tiny_bert_last_hidden(params, input_ids, attention_mask)
    h_bf = hidden.astype(jnp.bfloat16).astype(jnp.float32).reshape(B * S, H)
    w_bf = params["cls_w_t"].astype(jnp.bfloat16).astype(jnp.float32)
    ref = (h_bf @ w_bf + params["cls_b"]).reshape(B, S, L)
    assert jnp.allclose(logits.astype(jnp.float32), ref, atol=1e-4, rtol=1e-3), \
        "mismatch vs reference"

    # Also exercise the dropout (training) path once to make sure it runs.
    logits_train = event_extractor_classifier_forward(
        params, input_ids, attention_mask, training=True, rng=k_drop)
    logits_train = jax.block_until_ready(logits_train)
    assert logits_train.shape == (B, S, L)

    print("KERNEL_OK")
</pallas_src>

<mosaic_0001>
module attributes {stable_mosaic.version = 11 : i64} {
  func.func @_classifier_kernel(%arg0: i32, %arg1: memref<16x32xbf16, #tpu.memory_space<vmem>>, %arg2: memref<32x128xbf16, #tpu.memory_space<vmem>>, %arg3: memref<1x128xf32, #tpu.memory_space<vmem>>, %arg4: memref<16x128xf32, #tpu.memory_space<vmem>>) attributes {dimension_semantics = [#tpu.dimension_semantics<parallel>], iteration_bounds = array<i64: 1>, scalar_prefetch = 0 : i64, scratch_operands = 0 : i64, tpu.core_type = #tpu.core_type<tc>, window_params = [{transform_indices = @transform_0, window_bounds = array<i64: 16, 32>}, {pipeline_mode = #tpu.pipeline_mode<synchronous>, transform_indices = @transform_1, window_bounds = array<i64: 32, 128>}, {pipeline_mode = #tpu.pipeline_mode<synchronous>, transform_indices = @transform_2, window_bounds = array<i64: 1, 128>}, {transform_indices = @transform_3, window_bounds = array<i64: 16, 128>}]} {
    %c0 = arith.constant 0 : index
    %c0_0 = arith.constant 0 : index
    %0 = vector.load %arg1[%c0, %c0_0] : memref<16x32xbf16, #tpu.memory_space<vmem>>, vector<16x32xbf16>
    %c0_1 = arith.constant 0 : index
    %c0_2 = arith.constant 0 : index
    %1 = vector.load %arg2[%c0_1, %c0_2] : memref<32x128xbf16, #tpu.memory_space<vmem>>, vector<32x128xbf16>
    %cst = arith.constant dense<0.000000e+00> : vector<16x128xf32>
    %2 = tpu.matmul %0, %1, %cst {dimension_numbers = #tpu.dot_dimension_numbers<[1], [0], [0], [1], [0, 0, 1, 1], [], []>} : vector<16x32xbf16>, vector<32x128xbf16>, vector<16x128xf32> -> vector<16x128xf32>
    %c0_3 = arith.constant 0 : index
    %c0_4 = arith.constant 0 : index
    %3 = vector.load %arg3[%c0_3, %c0_4] : memref<1x128xf32, #tpu.memory_space<vmem>>, vector<1x128xf32>
    %4 = vector.broadcast %3 : vector<1x128xf32> to vector<16x128xf32>
    %5 = arith.addf %2, %4 : vector<16x128xf32>
    %c0_5 = arith.constant 0 : index
    %c0_6 = arith.constant 0 : index
    %6 = vector.load %arg4[%c0_5, %c0_6] : memref<16x128xf32, #tpu.memory_space<vmem>>, vector<16x128xf32>
    tpu.vector_store %arg4[%c0_5, %c0_6], %5 {strides = array<i32>} : memref<16x128xf32, #tpu.memory_space<vmem>>, vector<16x128xf32>,
    return
  }
  func.func @transform_0(%arg0: i32) -> (i32, i32) {
    %c0_i32 = arith.constant 0 : i32
    %c0_i32_0 = arith.constant 0 : i32
    return %arg0, %c0_i32 : i32, i32
  }
  func.func @transform_1(%arg0: i32) -> (i32, i32) {
    %c0_i32 = arith.constant 0 : i32
    %c0_i32_0 = arith.constant 0 : i32
    %c0_i32_1 = arith.constant 0 : i32
    return %c0_i32, %c0_i32_0 : i32, i32
  }
  func.func @transform_2(%arg0: i32) -> (i32, i32) {
    %c0_i32 = arith.constant 0 : i32
    %c0_i32_0 = arith.constant 0 : i32
    %c0_i32_1 = arith.constant 0 : i32
    return %c0_i32, %c0_i32_0 : i32, i32
  }
  func.func @transform_3(%arg0: i32) -> (i32, i32) {
    %c0_i32 = arith.constant 0 : i32
    %c0_i32_0 = arith.constant 0 : i32
    return %arg0, %c0_i32 : i32, i32
  }
}

</mosaic_0001>

<llo_original>
// kernel: tpu_custom_call.1
$region0: #{tpu_custom_call.1}
  #allocation0 [shape = 'u32[]', space=smem, size = 0x4, offset = 0x4, fixed_abs, tag = 'smem constant byte address 0x4 - core index']
  #allocation1 [shape = 'u32[144,128]{1,0:T(1,128)}', space=vmem, size = 0x12000, scoped, tag = 'internal scratch']
  %s0 = inlined_call_operand.hbm [shape: bf16[16,32], index: 0, kind: input, shape index: {}]
  %s1 = inlined_call_operand.hbm [shape: bf16[32,128], index: 1, kind: input, shape index: {}]
  %s2 = inlined_call_operand.vmem [shape: f32[1,128], index: 2, kind: input, shape index: {}]
  %s3 = inlined_call_operand.hbm [shape: f32[16,128], index: 3, kind: output, shape index: {}]
  %s4 = sld [smem:[#allocation0]]
  $region30: #{tpu_custom_call.1} parent=0
    _
  %s6 = ssub.s32 1, %s4
  %s7 = scalar_select 0, %s6, %s4
  $region1: #{tpu_custom_call.1} parent=0
    #allocation2 [shape = 'u8[4096]{0}', space=vmem, size = 0x1000, scoped, tag = 'input window, operand 0, single buffered']
    #allocation3 [shape = 's32[1]{0}', space=sflag, size = 0x4, scoped, tag = 'scoped memory for tpu_custom_call.1']
    #allocation4 [shape = 's32[1]{0}', space=sflag, size = 0x4, scoped, tag = 'scoped memory for tpu_custom_call.1']
    #allocation5 [shape = 'u8[8192]{0}', space=vmem, size = 0x2000, scoped, tag = 'input window, operand 1, single buffered']
    #allocation6 [shape = 's32[1]{0}', space=sflag, size = 0x4, scoped, tag = 'scoped memory for tpu_custom_call.1']
    #allocation7 [shape = 'u8[8192]{0}', space=vmem, size = 0x2000, scoped, tag = 'output window, operand 0, single buffered']
    %8 = vsyncpa [#allocation3], 0
    %9 = vsyncpa [#allocation6], 0
    %10 = vsyncpa [#allocation4], 0
    // Predicated region
    $region2: #{tpu_custom_call.1} parent=1 // pred_check
      _
    $region3: #{tpu_custom_call.1} parent=1 // pred_check_branch
      %12 = sbr.rel (0) target = $region5
    $region4: #{tpu_custom_call.1} parent=1 // pred_region
      %s14 = ssub.s32 128, 128
      %15 = vsyncadd [#allocation3], %s14
      %s16 = sshll.u32 [#allocation2], 4
      %s17 = int_to_ptr.vmem [resolvable:$true] %s16
      %22 = dma.hbm_to_vmem [thread:$0]  %s0, 128, %s17, [#allocation3], 64, 64, 4
    $region5: #{tpu_custom_call.1} parent=1 // pred_fallthru
      _
    // Predicated region
    $region6: #{tpu_custom_call.1} parent=1 // pred_check
      _
    $region7: #{tpu_custom_call.1} parent=1 // pred_check_branch
      %24 = sbr.rel (0) target = $region9
    $region8: #{tpu_custom_call.1} parent=1 // pred_region
      %s26 = ssub.s32 256, 256
      %27 = vsyncadd [#allocation6], %s26
      %s28 = sshll.u32 [#allocation5], 4
      %s29 = int_to_ptr.vmem [resolvable:$true] %s28
      %34 = dma.hbm_to_vmem [thread:$0]  %s1, 256, %s29, [#allocation6], 64, 64, 4
    $region9: #{tpu_custom_call.1} parent=1 // pred_fallthru
      _
    // Predicated region
    $region10: #{tpu_custom_call.1} parent=1 // pred_check
      _
    $region11: #{tpu_custom_call.1} parent=1 // pred_check_branch
      %36 = sbr.rel (0) target = $region13
    $region12: #{tpu_custom_call.1} parent=1 // pred_region
      _
    $region13: #{tpu_custom_call.1} parent=1 // pred_fallthru
      _
    // Predicated region
    $region14: #{tpu_custom_call.1} parent=1 // pred_check
      _
    $region15: #{tpu_custom_call.1} parent=1 // pred_check_branch
      %38 = sbr.rel (0) target = $region17
    $region16: #{tpu_custom_call.1} parent=1 // pred_region
      %39 = dma.done [#allocation3], 128
    $region17: #{tpu_custom_call.1} parent=1 // pred_fallthru
      _
    // Predicated region
    $region18: #{tpu_custom_call.1} parent=1 // pred_check
      _
    $region19: #{tpu_custom_call.1} parent=1 // pred_check_branch
      %41 = sbr.rel (0) target = $region21
    $region20: #{tpu_custom_call.1} parent=1 // pred_region
      %42 = dma.done [#allocation6], 256
    $region21: #{tpu_custom_call.1} parent=1 // pred_fallthru
      _
    %v44 = vld [vmem:[#allocation2] sm:$0xf]
    %v45 = vld [vmem:[#allocation2 + $0x4] sm:$0xf]
    %v46 = vld [vmem:[#allocation5] sm:$0xf]
    %v47 = vld [vmem:[#allocation5 + $0x4] sm:$0xf]
    %v48 = vld [vmem:[#allocation5 + $0x8] sm:$0xf]
    %v49 = vld [vmem:[#allocation5 + $0xc] sm:$0xf]
    %v50 = vld [vmem:[%s2] sm:$0x1]
    %v52 = vlaneseq
    %v53 = vshrl.u32 %v52, 7
    %v54 = vsub.s32 0, %v53
    %v55 = vrot.slane %v50, %v54
    %v59 = vunpack.c.l.b16 %v44
    %v60 = vunpack.c.l.b16 %v45
    %v61 = vpack.c.b16 %v60, %v59
    %v66 = vunpack.c.l.b16 %v46
    %v67 = vunpack.c.l.b16 %v47
    %v68 = vunpack.c.l.b16 %v48
    %v69 = vunpack.c.l.b16 %v49
    %v70 = vpack.c.b16 %v67, %v66
    %v71 = vpack.c.b16 %v69, %v68
    %vm74 = vcmask 261120
    %v76 = vsel %vm74, %v61, 0
    %78 = vmatprep.subr.bf16.mxu0 0
    %79 = vmatpush1.bf16.msra.mxu0 0
    %80 = vmatprep.subr.bf16.mxu0 0
    %81 = vmatpush1.bf16.msra.mxu0 0
    %82 = vmatprep.subr.bf16.mxu0 0
    %83 = vmatpush1.bf16.msra.mxu0 0
    %84 = vmatprep.subr.bf16.mxu0 0
    %85 = vmatpush1.bf16.msra.mxu0 0
    %86 = vmatprep.subr.bf16.mxu0 0
    %87 = vmatpush1.bf16.msra.mxu0 0
    %88 = vmatprep.subr.bf16.mxu0 0
    %89 = vmatpush1.bf16.msra.mxu0 0
    %90 = vmatprep.subr.bf16.mxu0 0
    %91 = vmatpush1.bf16.msra.mxu0 %v71
    %92 = vmatprep.subr.bf16.mxu0 0
    %93 = vmatpush1.bf16.msra.mxu0 %v70
    %94 = vmatprep.subr.bf16.mxu0 0
    %95 = vmatpush2.bf16.msra.mxu0 0
    %96 = vmatprep.subr.bf16.mxu0 0
    %97 = vmatpush2.bf16.msra.mxu0 0
    %98 = vmatprep.subr.bf16.mxu0 0
    %99 = vmatpush2.bf16.msra.mxu0 0
    %100 = vmatprep.subr.bf16.mxu0 0
    %101 = vmatpush2.bf16.msra.mxu0 0
    %102 = vmatprep.subr.bf16.mxu0 0
    %103 = vmatpush2.bf16.msra.mxu0 0
    %104 = vmatprep.subr.bf16.mxu0 0
    %105 = vmatpush2.bf16.msra.mxu0 0
    %106 = vmatprep.subr.bf16.mxu0 0
    %107 = vmatpush2.bf16.msra.mxu0 0
    %108 = vmatprep.subr.bf16.mxu0 0
    %109 = vmatpush2.bf16.msra.mxu0 0
    %110 = vmatprep.mubr.bf16.mxu0 0
    %111 = vmatmul.mubr.bf16.gmra.mxu0 %v76
    %v112 = vpop.f32.mrf.mxu0
    %v113 = vadd.f32 %v55, %v112
    %v114 = vpop.f32.mrf.mxu0
    %v115 = vpop.f32.mrf.mxu0
    %v116 = vadd.f32 %v55, %v115
    %v117 = vpop.f32.mrf.mxu0
    %118 = vdwg.mxu0
    %119 = vst [vmem:[#allocation7] sm:$0xff] %v113
    %120 = vst [vmem:[#allocation7 + $0x8] sm:$0xff] %v116
    // Predicated region
    $region22: #{tpu_custom_call.1} parent=1 // pred_check
      _
    $region23: #{tpu_custom_call.1} parent=1 // pred_check_branch
      %122 = sbr.rel (0) target = $region25
    $region24: #{tpu_custom_call.1} parent=1 // pred_region
      %s124 = ssub.s32 256, 256
      %125 = vsyncadd [#allocation4], %s124
      %s126 = sshll.u32 [#allocation7], 4
      %s127 = int_to_ptr.vmem [resolvable:$true] %s126
      %132 = dma.vmem_to_hbm [thread:$0]  %s127, 256, %s3, [#allocation4], 128, 128, 8
    $region25: #{tpu_custom_call.1} parent=1 // pred_fallthru
      _
    // Predicated region
    $region26: #{tpu_custom_call.1} parent=1 // pred_check
      _
    $region27: #{tpu_custom_call.1} parent=1 // pred_check_branch
      %134 = sbr.rel (0) target = $region29
    $region28: #{tpu_custom_call.1} parent=1 // pred_region
      %135 = dma.done [#allocation4], 256
    $region29: #{tpu_custom_call.1} parent=1 // pred_fallthru
      _
    %136 = vsyncpa [#allocation3], 1
    %137 = vsyncpa [#allocation6], 1
    %138 = vsyncpa [#allocation4], 1

</llo_original>
